<compile_context>
chip_gen: v7x
topology: tpu7x:2x2x1
jax: 0.10.0
libtpu: 0.0.40
codegen_flags: <defaults>
</compile_context>

<pallas_src>
import functools

import jax
import jax.numpy as jnp
from jax.experimental import pallas as pl
from jax.experimental.pallas import tpu as pltpu


def _dice_kernel(p_ref, t_ref, num_ref, den_ref, *, p_exp, needs_mask,
                 valid_rows_last):
    j = pl.program_id(1)                    # chunk index along the row axis
    nb, tile_r, _ = p_ref.shape
    s = num_ref.shape[1]                    # 8 (vreg partial) or 1 (tiny-rows fallback)

    def step(mask_rows):
        pr = p_ref[...].astype(jnp.float32)     # (nb, tile_r, 128)
        tg = t_ref[...].astype(jnp.float32)

        if mask_rows:
            # Only the last chunk may read rows past the true extent (Pallas
            # pads boundary blocks with unspecified values); zero them out.
            rid = jax.lax.broadcasted_iota(jnp.int32, (nb, tile_r, 128), 1)
            valid = rid < valid_rows_last
            zero = jnp.zeros_like(pr)
            pr = jnp.where(valid, pr, zero)
            tg = jnp.where(valid, tg, zero)

        pn = pr * tg
        if p_exp == 2:
            pd = pr * pr + tg * tg
        elif p_exp == 1:
            pd = pr + tg
        else:
            pd = jnp.power(pr, p_exp) + jnp.power(tg, p_exp)

        if s == 8:
            # Pure VPU: fold row groups of 8 into a single (nb, 8, 128) vreg
            # partial (no cross-lane / sublane XLU work per chunk).
            pn = jnp.sum(pn.reshape(nb, tile_r // 8, 8, 128), axis=1)
            pd = jnp.sum(pd.reshape(nb, tile_r // 8, 8, 128), axis=1)
        else:
            # rows not a multiple of 8 (tiny-M fallback): single sublane reduce.
            pn = jnp.sum(pn, axis=1, keepdims=True)
            pd = jnp.sum(pd, axis=1, keepdims=True)

        # Accumulate straight into the resident output block (no scratch).
        @pl.when(j == 0)
        def _():
            num_ref[...] = pn
            den_ref[...] = pd

        @pl.when(j > 0)
        def _():
            num_ref[...] += pn
            den_ref[...] += pd

    if needs_mask:
        last = pl.num_programs(1) - 1

        @pl.when(j != last)
        def _():
            step(False)

        @pl.when(j == last)
        def _():
            step(True)
    else:
        step(False)


def binary_dice_loss(predict, target, smooth=1.0, p=2, max_tile_rows=2048):
    """Pallas implementation of BinaryDiceLoss.forward (returns loss.sum())."""
    assert predict.shape[0] == target.shape[0], "predict & target batch size don't match"
    n = predict.shape[0]
    pred2d = predict.reshape(n, -1)
    targ2d = target.reshape(n, -1)
    m = pred2d.shape[1]

    # Lane-dense [N, rows, 128] view requires M % 128 == 0 (true for typical
    # C*H*W).  Rare ragged case: minimal zero-pad (zeros are neutral in both
    # sums only for p > 0, hence the assert).
    if m % 128 != 0:
        assert p > 0, "zero-padding the flattened dim is only valid for p > 0"
        m128 = ((m + 127) // 128) * 128
        pred2d = jnp.pad(pred2d, ((0, 0), (0, m128 - m)))
        targ2d = jnp.pad(targ2d, ((0, 0), (0, m128 - m)))
        m = m128
    rows = m // 128
    pred3d = pred2d.reshape(n, rows, 128)   # bitcast view, no HBM copy
    targ3d = targ2d.reshape(n, rows, 128)

    if rows <= max_tile_rows:
        tile_r = rows                       # full extent: always a legal block dim
        n_chunks = 1
        needs_mask = False
        # Small M: pack several batch rows per block to amortize per-step cost.
        nb = max(1, min(n, max_tile_rows // max(tile_r, 1)))
    else:
        tile_r = max_tile_rows              # multiple of 8 (sublane aligned)
        n_chunks = pl.cdiv(rows, tile_r)
        needs_mask = (rows % tile_r) != 0
        nb = 1
    if needs_mask:
        assert p > 0, "row masking is only valid for p > 0"
    valid_rows_last = rows - (n_chunks - 1) * tile_r

    s = 8 if (tile_r % 8 == 0) else 1       # partial-output sublane extent
    n_batch_blocks = pl.cdiv(n, nb)

    kernel = functools.partial(
        _dice_kernel, p_exp=p, needs_mask=needs_mask,
        valid_rows_last=valid_rows_last)

    num_out, den_out = pl.pallas_call(
        kernel,
        out_shape=(jax.ShapeDtypeStruct((n, s, 128), jnp.float32),
                   jax.ShapeDtypeStruct((n, s, 128), jnp.float32)),
        grid_spec=pltpu.PrefetchScalarGridSpec(
            num_scalar_prefetch=0,
            grid=(n_batch_blocks, n_chunks),
            in_specs=[
                pl.BlockSpec((nb, tile_r, 128), lambda b, j: (b, j, 0)),
                pl.BlockSpec((nb, tile_r, 128), lambda b, j: (b, j, 0)),
            ],
            out_specs=(
                pl.BlockSpec((nb, s, 128), lambda b, j: (b, 0, 0)),
                pl.BlockSpec((nb, s, 128), lambda b, j: (b, 0, 0)),
            ),
        ),
        compiler_params=pltpu.CompilerParams(
            # batch axis parallel (megacore), reduction axis arbitrary.
            dimension_semantics=("parallel", "arbitrary"),
            vmem_limit_bytes=48 * 1024 * 1024,
        ),
    )(pred3d, targ3d)

    # Tiny per-row finish in the wrapper (keeps the kernel epilogue trivial).
    num = 2.0 * jnp.sum(num_out, axis=(1, 2)) + jnp.float32(smooth)
    den = jnp.sum(den_out, axis=(1, 2)) + jnp.float32(smooth)
    loss = 1.0 - num / den
    return jnp.sum(loss)                    # BinaryDiceLoss.forward returns loss.sum()


def _reference(predict, target, smooth=1.0, p=2):
    n = predict.shape[0]
    pr = predict.reshape(n, -1).astype(jnp.float32)
    tg = target.reshape(n, -1).astype(jnp.float32)
    num = 2.0 * jnp.sum(pr * tg, axis=1) + smooth
    den = jnp.sum(pr**p + tg**p, axis=1) + smooth
    return jnp.sum(1.0 - num / den)


if __name__ == "__main__":
    key = jax.random.PRNGKey(0)
    k1, k2 = jax.random.split(key)

    # predict: sigmoid-like probabilities; target: binary mask. Shape [N, C, H, W].
    x_shape = (2, 4, 16, 16)
    predict = jax.nn.sigmoid(jax.random.normal(k1, x_shape, dtype=jnp.float32))
    target = (jax.random.uniform(k2, x_shape) > 0.5).astype(jnp.float32)

    loss = binary_dice_loss(predict, target, smooth=1.0, p=2)
    loss = jax.block_until_ready(loss)

    ref = _reference(predict, target, smooth=1.0, p=2)
    assert jnp.allclose(loss, ref, rtol=1e-5, atol=1e-5), (loss, ref)

    print("KERNEL_OK")
</pallas_src>

<mosaic_0001>
module attributes {stable_mosaic.version = 11 : i64} {
  func.func @_dice_kernel(%arg0: i32, %arg1: i32, %arg2: memref<2x8x128xf32, #tpu.memory_space<vmem>>, %arg3: memref<2x8x128xf32, #tpu.memory_space<vmem>>, %arg4: memref<2x8x128xf32, #tpu.memory_space<vmem>>, %arg5: memref<2x8x128xf32, #tpu.memory_space<vmem>>) attributes {dimension_semantics = [#tpu.dimension_semantics<parallel>, #tpu.dimension_semantics<arbitrary>], iteration_bounds = array<i64: 1, 1>, scalar_prefetch = 0 : i64, scratch_operands = 0 : i64, tpu.core_type = #tpu.core_type<tc>, window_params = [{transform_indices = @transform_0, window_bounds = array<i64: 2, 8, 128>}, {transform_indices = @transform_1, window_bounds = array<i64: 2, 8, 128>}, {transform_indices = @transform_2, window_bounds = array<i64: 2, 8, 128>}, {transform_indices = @transform_3, window_bounds = array<i64: 2, 8, 128>}]} {
    %c0 = arith.constant 0 : index
    %c0_0 = arith.constant 0 : index
    %c0_1 = arith.constant 0 : index
    %0 = vector.load %arg2[%c0, %c0_0, %c0_1] : memref<2x8x128xf32, #tpu.memory_space<vmem>>, vector<2x8x128xf32>
    %c0_2 = arith.constant 0 : index
    %c0_3 = arith.constant 0 : index
    %c0_4 = arith.constant 0 : index
    %1 = vector.load %arg3[%c0_2, %c0_3, %c0_4] : memref<2x8x128xf32, #tpu.memory_space<vmem>>, vector<2x8x128xf32>
    %2 = arith.mulf %0, %1 : vector<2x8x128xf32>
    %3 = arith.mulf %0, %0 : vector<2x8x128xf32>
    %4 = arith.mulf %1, %1 : vector<2x8x128xf32>
    %5 = arith.addf %3, %4 : vector<2x8x128xf32>
    %6 = vector.shape_cast %2 : vector<2x8x128xf32> to vector<2x1x8x128xf32>
    %cst = arith.constant dense<0.000000e+00> : vector<2x8x128xf32>
    %7 = vector.multi_reduction <add>, %6, %cst [1] : vector<2x1x8x128xf32> to vector<2x8x128xf32>
    %8 = vector.shape_cast %5 : vector<2x8x128xf32> to vector<2x1x8x128xf32>
    %cst_5 = arith.constant dense<0.000000e+00> : vector<2x8x128xf32>
    %9 = vector.multi_reduction <add>, %8, %cst_5 [1] : vector<2x1x8x128xf32> to vector<2x8x128xf32>
    %c0_i32 = arith.constant 0 : i32
    %10 = arith.cmpi eq, %arg1, %c0_i32 : i32
    %11 = arith.extui %10 : i1 to i32
    %c0_i32_6 = arith.constant 0 : i32
    %12 = arith.cmpi ne, %11, %c0_i32_6 : i32
    scf.if %12 {
      %c0_9 = arith.constant 0 : index
      %c0_10 = arith.constant 0 : index
      %c0_11 = arith.constant 0 : index
      %16 = vector.load %arg4[%c0_9, %c0_10, %c0_11] : memref<2x8x128xf32, #tpu.memory_space<vmem>>, vector<2x8x128xf32>
      tpu.vector_store %arg4[%c0_9, %c0_10, %c0_11], %7 {strides = array<i32>} : memref<2x8x128xf32, #tpu.memory_space<vmem>>, vector<2x8x128xf32>,
      %c0_12 = arith.constant 0 : index
      %c0_13 = arith.constant 0 : index
      %c0_14 = arith.constant 0 : index
      %17 = vector.load %arg5[%c0_12, %c0_13, %c0_14] : memref<2x8x128xf32, #tpu.memory_space<vmem>>, vector<2x8x128xf32>
      tpu.vector_store %arg5[%c0_12, %c0_13, %c0_14], %9 {strides = array<i32>} : memref<2x8x128xf32, #tpu.memory_space<vmem>>, vector<2x8x128xf32>,
    } else {
    }
    %c0_i32_7 = arith.constant 0 : i32
    %13 = arith.cmpi sgt, %arg1, %c0_i32_7 : i32
    %14 = arith.extui %13 : i1 to i32
    %c0_i32_8 = arith.constant 0 : i32
    %15 = arith.cmpi ne, %14, %c0_i32_8 : i32
    scf.if %15 {
      %c0_9 = arith.constant 0 : index
      %c0_10 = arith.constant 0 : index
      %c0_11 = arith.constant 0 : index
      %16 = vector.load %arg4[%c0_9, %c0_10, %c0_11] : memref<2x8x128xf32, #tpu.memory_space<vmem>>, vector<2x8x128xf32>
      %17 = arith.addf %16, %7 : vector<2x8x128xf32>
      %c0_12 = arith.constant 0 : index
      %c0_13 = arith.constant 0 : index
      %c0_14 = arith.constant 0 : index
      %18 = vector.load %arg4[%c0_12, %c0_13, %c0_14] : memref<2x8x128xf32, #tpu.memory_space<vmem>>, vector<2x8x128xf32>
      tpu.vector_store %arg4[%c0_12, %c0_13, %c0_14], %17 {strides = array<i32>} : memref<2x8x128xf32, #tpu.memory_space<vmem>>, vector<2x8x128xf32>,
      %c0_15 = arith.constant 0 : index
      %c0_16 = arith.constant 0 : index
      %c0_17 = arith.constant 0 : index
      %19 = vector.load %arg5[%c0_15, %c0_16, %c0_17] : memref<2x8x128xf32, #tpu.memory_space<vmem>>, vector<2x8x128xf32>
      %20 = arith.addf %19, %9 : vector<2x8x128xf32>
      %c0_18 = arith.constant 0 : index
      %c0_19 = arith.constant 0 : index
      %c0_20 = arith.constant 0 : index
      %21 = vector.load %arg5[%c0_18, %c0_19, %c0_20] : memref<2x8x128xf32, #tpu.memory_space<vmem>>, vector<2x8x128xf32>
      tpu.vector_store %arg5[%c0_18, %c0_19, %c0_20], %20 {strides = array<i32>} : memref<2x8x128xf32, #tpu.memory_space<vmem>>, vector<2x8x128xf32>,
    } else {
    }
    return
  }
  func.func @transform_0(%arg0: i32, %arg1: i32) -> (i32, i32, i32) {
    %c0_i32 = arith.constant 0 : i32
    %c0_i32_0 = arith.constant 0 : i32
    return %arg0, %arg1, %c0_i32 : i32, i32, i32
  }
  func.func @transform_1(%arg0: i32, %arg1: i32) -> (i32, i32, i32) {
    %c0_i32 = arith.constant 0 : i32
    %c0_i32_0 = arith.constant 0 : i32
    return %arg0, %arg1, %c0_i32 : i32, i32, i32
  }
  func.func @transform_2(%arg0: i32, %arg1: i32) -> (i32, i32, i32) {
    %c0_i32 = arith.constant 0 : i32
    %c0_i32_0 = arith.constant 0 : i32
    %c0_i32_1 = arith.constant 0 : i32
    return %arg0, %c0_i32, %c0_i32_0 : i32, i32, i32
  }
  func.func @transform_3(%arg0: i32, %arg1: i32) -> (i32, i32, i32) {
    %c0_i32 = arith.constant 0 : i32
    %c0_i32_0 = arith.constant 0 : i32
    %c0_i32_1 = arith.constant 0 : i32
    return %arg0, %c0_i32, %c0_i32_0 : i32, i32, i32
  }
}

</mosaic_0001>

<llo_original>
// kernel: tpu_custom_call.1
$region0: #{tpu_custom_call.1}
  #allocation0 [shape = 'u32[]', space=smem, size = 0x4, offset = 0x4, fixed_abs, tag = 'smem constant byte address 0x4 - core index']
  #allocation1 [shape = 'u32[144,128]{1,0:T(1,128)}', space=vmem, size = 0x12000, scoped, tag = 'internal scratch']
  %s0 = inlined_call_operand.hbm [shape: f32[2,8,128], index: 0, kind: input, shape index: {}]
  %s1 = inlined_call_operand.hbm [shape: f32[2,8,128], index: 1, kind: input, shape index: {}]
  %s2 = inlined_call_operand.hbm [shape: f32[2,8,128], index: 2, kind: output, shape index: {0}]
  %s3 = inlined_call_operand.hbm [shape: f32[2,8,128], index: 3, kind: output, shape index: {1}]
  %4 = xla_tuple %s2, %s3
  %s5 = sld [smem:[#allocation0]]
  $region42: #{tpu_custom_call.1} parent=0
    _
  %s7 = ssub.s32 1, %s5
  %s8 = scalar_select 0, %s7, %s5
  $region1: #{tpu_custom_call.1} parent=0
    #allocation2 [shape = 'u8[8192]{0}', space=vmem, size = 0x2000, scoped, tag = 'input window, operand 0, single buffered']
    #allocation3 [shape = 's32[1]{0}', space=sflag, size = 0x4, scoped, tag = 'scoped memory for tpu_custom_call.1']
    #allocation4 [shape = 's32[1]{0}', space=sflag, size = 0x4, scoped, tag = 'scoped memory for tpu_custom_call.1']
    #allocation5 [shape = 'u8[8192]{0}', space=vmem, size = 0x2000, scoped, tag = 'input window, operand 1, single buffered']
    #allocation6 [shape = 's32[1]{0}', space=sflag, size = 0x4, scoped, tag = 'scoped memory for tpu_custom_call.1']
    #allocation7 [shape = 'u8[8192]{0}', space=vmem, size = 0x2000, scoped, tag = 'output window, operand 0, single buffered']
    #allocation8 [shape = 'u8[8192]{0}', space=vmem, size = 0x2000, scoped, tag = 'output window, operand 1, single buffered']
    #allocation9 [shape = 's32[1]{0}', space=sflag, size = 0x4, scoped, tag = 'scoped memory for tpu_custom_call.1']
    %9 = vsyncpa [#allocation3], 0
    %10 = vsyncpa [#allocation6], 0
    %11 = vsyncpa [#allocation4], 0
    %12 = vsyncpa [#allocation9], 0
    // Predicated region
    $region2: #{tpu_custom_call.1} parent=1 // pred_check
      _
    $region3: #{tpu_custom_call.1} parent=1 // pred_check_branch
      %14 = sbr.rel (0) target = $region5
    $region4: #{tpu_custom_call.1} parent=1 // pred_region
      %s16 = ssub.s32 256, 256
      %17 = vsyncadd [#allocation3], %s16
      %s18 = sshll.u32 [#allocation2], 4
      %s19 = int_to_ptr.vmem [resolvable:$true] %s18
      %24 = dma.hbm_to_vmem [thread:$0]  %s0, 256, %s19, [#allocation3], 128, 128, 8
    $region5: #{tpu_custom_call.1} parent=1 // pred_fallthru
      _
    // Predicated region
    $region6: #{tpu_custom_call.1} parent=1 // pred_check
      _
    $region7: #{tpu_custom_call.1} parent=1 // pred_check_branch
      %26 = sbr.rel (0) target = $region9
    $region8: #{tpu_custom_call.1} parent=1 // pred_region
      %s28 = ssub.s32 256, 256
      %29 = vsyncadd [#allocation6], %s28
      %s30 = sshll.u32 [#allocation5], 4
      %s31 = int_to_ptr.vmem [resolvable:$true] %s30
      %36 = dma.hbm_to_vmem [thread:$0]  %s1, 256, %s31, [#allocation6], 128, 128, 8
    $region9: #{tpu_custom_call.1} parent=1 // pred_fallthru
      _
    // Predicated region
    $region10: #{tpu_custom_call.1} parent=1 // pred_check
      _
    $region11: #{tpu_custom_call.1} parent=1 // pred_check_branch
      %38 = sbr.rel (0) target = $region13
    $region12: #{tpu_custom_call.1} parent=1 // pred_region
      %39 = dma.done [#allocation3], 256
    $region13: #{tpu_custom_call.1} parent=1 // pred_fallthru
      _
    // Predicated region
    $region14: #{tpu_custom_call.1} parent=1 // pred_check
      _
    $region15: #{tpu_custom_call.1} parent=1 // pred_check_branch
      %41 = sbr.rel (0) target = $region17
    $region16: #{tpu_custom_call.1} parent=1 // pred_region
      %42 = dma.done [#allocation6], 256
    $region17: #{tpu_custom_call.1} parent=1 // pred_fallthru
      _
    %v43 = vld [vmem:[#allocation2] sm:$0xff]
    %v44 = vld [vmem:[#allocation2 + $0x8] sm:$0xff]
    %v45 = vld [vmem:[#allocation5] sm:$0xff]
    %v46 = vld [vmem:[#allocation5 + $0x8] sm:$0xff]
    %v47 = vmul.f32 %v43, %v45
    %v48 = vmul.f32 %v44, %v46
    %v49 = vmul.f32 %v43, %v43
    %v50 = vmul.f32 %v44, %v44
    %v51 = vmul.f32 %v45, %v45
    %v52 = vmul.f32 %v46, %v46
    %v53 = vadd.f32 %v49, %v51
    %v54 = vadd.f32 %v50, %v52
    %v55 = vadd.f32 %v47, 0.0
    %v56 = vadd.f32 %v48, 0.0
    %v57 = vadd.f32 %v53, 0.0
    %v58 = vadd.f32 %v54, 0.0
    %p59 = scmp.eq.s32.totalorder 0, 0
    // Predicated region
    $region18: #{tpu_custom_call.1} parent=1 // pred_check
      %p60 = pneg %p59
    $region19: #{tpu_custom_call.1} parent=1 // pred_check_branch
      %62 = sbr.rel (%p60) target = $region21
    $region20: #{tpu_custom_call.1} parent=1 // pred_region
      %63 = vst [vmem:[#allocation7] sm:$0xff] %v55
      %64 = vst [vmem:[#allocation7 + $0x8] sm:$0xff] %v56
      %65 = vst [vmem:[#allocation8] sm:$0xff] %v57
      %66 = vst [vmem:[#allocation8 + $0x8] sm:$0xff] %v58
    $region21: #{tpu_custom_call.1} parent=1 // pred_fallthru
      _
    %p67 = scmp.gt.s32.totalorder 0, 0
    // Predicated region
    $region22: #{tpu_custom_call.1} parent=1 // pred_check
      %p68 = pneg %p67
    $region23: #{tpu_custom_call.1} parent=1 // pred_check_branch
      %70 = sbr.rel (%p68) target = $region25
    $region24: #{tpu_custom_call.1} parent=1 // pred_region
      %v71 = vld [vmem:[#allocation7] sm:$0xff]
      %v72 = vld [vmem:[#allocation7 + $0x8] sm:$0xff]
      %v73 = vadd.f32 %v71, %v55
      %v74 = vadd.f32 %v72, %v56
      %75 = vst [vmem:[#allocation7] sm:$0xff] %v73
      %76 = vst [vmem:[#allocation7 + $0x8] sm:$0xff] %v74
      %v77 = vld [vmem:[#allocation8] sm:$0xff]
      %v78 = vld [vmem:[#allocation8 + $0x8] sm:$0xff]
      %v79 = vadd.f32 %v77, %v57
      %v80 = vadd.f32 %v78, %v58
      %81 = vst [vmem:[#allocation8] sm:$0xff] %v79
      %82 = vst [vmem:[#allocation8 + $0x8] sm:$0xff] %v80
    $region25: #{tpu_custom_call.1} parent=1 // pred_fallthru
      _
    // Predicated region
    $region26: #{tpu_custom_call.1} parent=1 // pred_check
      _
    $region27: #{tpu_custom_call.1} parent=1 // pred_check_branch
      %84 = sbr.rel (0) target = $region29
    $region28: #{tpu_custom_call.1} parent=1 // pred_region
      %s86 = ssub.s32 256, 256
      %87 = vsyncadd [#allocation4], %s86
      %s88 = sshll.u32 [#allocation7], 4
      %s89 = int_to_ptr.vmem [resolvable:$true] %s88
      %94 = dma.vmem_to_hbm [thread:$0]  %s89, 256, %s2, [#allocation4], 128, 128, 8
    $region29: #{tpu_custom_call.1} parent=1 // pred_fallthru
      _
    // Predicated region
    $region30: #{tpu_custom_call.1} parent=1 // pred_check
      _
    $region31: #{tpu_custom_call.1} parent=1 // pred_check_branch
      %96 = sbr.rel (0) target = $region33
    $region32: #{tpu_custom_call.1} parent=1 // pred_region
      %s98 = ssub.s32 256, 256
      %99 = vsyncadd [#allocation9], %s98
      %s100 = sshll.u32 [#allocation8], 4
      %s101 = int_to_ptr.vmem [resolvable:$true] %s100
      %106 = dma.vmem_to_hbm [thread:$0]  %s101, 256, %s3, [#allocation9], 128, 128, 8
    $region33: #{tpu_custom_call.1} parent=1 // pred_fallthru
      _
    // Predicated region
    $region34: #{tpu_custom_call.1} parent=1 // pred_check
      _
    $region35: #{tpu_custom_call.1} parent=1 // pred_check_branch
      %108 = sbr.rel (0) target = $region37
    $region36: #{tpu_custom_call.1} parent=1 // pred_region
      %109 = dma.done [#allocation4], 256
    $region37: #{tpu_custom_call.1} parent=1 // pred_fallthru
      _
    // Predicated region
    $region38: #{tpu_custom_call.1} parent=1 // pred_check
      _
    $region39: #{tpu_custom_call.1} parent=1 // pred_check_branch
      %111 = sbr.rel (0) target = $region41
    $region40: #{tpu_custom_call.1} parent=1 // pred_region
      %112 = dma.done [#allocation9], 256
    $region41: #{tpu_custom_call.1} parent=1 // pred_fallthru
      _
    %113 = vsyncpa [#allocation3], 1
    %114 = vsyncpa [#allocation6], 1
    %115 = vsyncpa [#allocation4], 1
    %116 = vsyncpa [#allocation9], 1

</llo_original>
